<compile_context>
chip_gen: v7x
topology: tpu7x:2x2x1
jax: 0.10.0
libtpu: 0.0.40
codegen_flags: <defaults>
</compile_context>

<pallas_src>
import jax
import jax.numpy as jnp
from jax import lax
from jax.experimental import pallas as pl
from jax.experimental.pallas import tpu as pltpu

BN_EPS = 1e-5


def _grouped_weight_taps(w_oihw, Cin, groups):
    """(Cout, Cin//groups, K, K) grouped weight -> dense per-tap (K*K, Cout, Cin).

    Block-diagonal expansion is acceptable for small `groups` (contraction dim pads to
    128 lanes anyway).  # TODO(synk): specialize depthwise (groups == Cin) as VPU FMAs.
    """
    Cout, Cin_g, K, _ = w_oihw.shape
    cout_g = Cout // groups
    w_full = jnp.zeros((K * K, Cout, Cin), w_oihw.dtype)
    for g in range(groups):
        blk = jnp.transpose(w_oihw[g * cout_g:(g + 1) * cout_g], (2, 3, 0, 1))
        blk = blk.reshape(K * K, cout_g, Cin_g)
        w_full = w_full.at[:, g * cout_g:(g + 1) * cout_g,
                           g * Cin_g:(g + 1) * Cin_g].set(blk)
    return w_full


def _full_spec(shape):
    zeros = (0,) * len(shape)
    return pl.BlockSpec(shape, lambda n: zeros)


def dsconvse_pallas(x_nchw, params, K, stride, groups):
    N, Cin, H, W = x_nchw.shape
    Cout = params["wconv_t"].shape[0]
    Cr = params["w1"].shape[1]
    s = stride
    Ho = (H - K) // s + 1
    Wo = (W - K) // s + 1
    P = Ho * Wo

    # ---- stride-phase restructuring (once, at XLA level; ~|x| bytes, no im2col). ----
    x_nhwc = jnp.transpose(x_nchw, (0, 2, 3, 1))
    Hp = -(-H // s) * s
    Wp = -(-W // s) * s
    if (Hp, Wp) != (H, W):
        x_nhwc = jnp.pad(x_nhwc, ((0, 0), (0, Hp - H), (0, Wp - W), (0, 0)))
    Hq, Wq = Hp // s, Wp // s
    x_ph = x_nhwc.reshape(N, Hq, s, Wq, s, Cin)
    x_ph = jnp.transpose(x_ph, (0, 2, 4, 1, 3, 5))        # (N, s, s, Hq, Wq, Cin)
    x_flat = x_ph.reshape(N, s * s * Hq * Wq, Cin)
    x_flat = jnp.pad(x_flat, ((0, 0), (0, Wq), (0, 0)))   # guard rows for tap offsets
    R = s * s * Hq * Wq + Wq

    PL = Ho * Wq                                          # positions incl. junk cols
    P_pad = ((PL + 127) // 128) * 128                     # lane-dense output width

    w_taps = _grouped_weight_taps(params["wconv_t"], Cin, groups)  # (K*K, Cout, Cin)

    # ------------------ pass 1: conv (K*K shifted matmuls) + BN partial stats -------
    def conv_stats_kernel(x_ref, w_ref, y_ref, stats_ref):
        acc = jnp.zeros((Cout, PL), jnp.float32)
        for kh in range(K):                 # static unroll, K is small
            for kw in range(K):
                ph = (kh % s) * s + (kw % s)
                start = (ph * Hq + kh // s) * Wq + kw // s
                xt = x_ref[0, pl.ds(start, PL), :]          # (PL, Cin) contiguous slice
                # (Cout,Cin) contracted with (PL,Cin) on Cin -> (Cout, PL): channel-major,
                # spatial positions on the lane axis.
                acc = acc + lax.dot_general(
                    w_ref[kh * K + kw], xt,
                    dimension_numbers=(((1,), (1,)), ((), ())),
                    preferred_element_type=jnp.float32)
        # per-image BN partial statistics over the valid (non-junk) positions only
        lane = lax.broadcasted_iota(jnp.int32, (Cout, PL), 1)
        valid = (lane % Wq) < Wo
        acc_v = jnp.where(valid, acc, 0.0)
        ssum = jnp.sum(acc_v, axis=1, keepdims=True)        # (Cout, 1)
        ssq = jnp.sum(acc_v * acc_v, axis=1, keepdims=True)  # (Cout, 1)
        stats_ref[0] = jnp.concatenate([ssum, ssq], axis=1)  # (Cout, 2)
        pad = P_pad - PL
        if pad:
            acc_v = jnp.concatenate(
                [acc_v, jnp.zeros((Cout, pad), jnp.float32)], axis=1)
        y_ref[0] = acc_v                                     # lane-dense (Cout, P_pad)

    y_t, stats = pl.pallas_call(
        conv_stats_kernel,
        grid=(N,),
        in_specs=[
            pl.BlockSpec((1, R, Cin), lambda n: (n, 0, 0)),
            pl.BlockSpec((K * K, Cout, Cin), lambda n: (0, 0, 0)),
        ],
        out_specs=(
            pl.BlockSpec((1, Cout, P_pad), lambda n: (n, 0, 0)),
            pl.BlockSpec((1, Cout, 2), lambda n: (n, 0, 0)),
        ),
        out_shape=(
            jax.ShapeDtypeStruct((N, Cout, P_pad), jnp.float32),
            jax.ShapeDtypeStruct((N, Cout, 2), jnp.float32),
        ),
        compiler_params=pltpu.CompilerParams(dimension_semantics=("parallel",)),
    )(x_flat, w_taps)

    # ---- fold BN (training-mode batch stats) into one per-channel FMA. ----
    cnt = float(N * P)
    tot = jnp.sum(stats[:, :, 0], axis=0)
    totsq = jnp.sum(stats[:, :, 1], axis=0)
    mean = tot / cnt
    var = jnp.maximum(totsq / cnt - mean * mean, 0.0)
    scale_v = params["gamma"] * lax.rsqrt(var + BN_EPS)
    bias_v = params["beta"] - mean * scale_v
    scale = scale_v.reshape(Cout, 1).astype(jnp.float32)
    bias = bias_v.reshape(Cout, 1).astype(jnp.float32)

    ws = params["ws"].reshape(1, Cout)
    bs = params["bs"].reshape(1, 1)
    w1t = params["w1"].T                  # (Cr, Cout)
    b1 = params["b1"].reshape(Cr, 1)
    w2t = params["w2"].T                  # (Cout, Cr)
    b2 = params["b2"].reshape(Cout, 1)

    # -------- pass 2: BN FMA + ReLU + sSE (MXU) + cSE (masked GAP via MXU) + blend ---
    def se_kernel(y_ref, scale_ref, bias_ref, ws_ref, bs_ref,
                  w1t_ref, b1_ref, w2t_ref, b2_ref, out_ref):
        y = y_ref[0] * scale_ref[...] + bias_ref[...]       # (Cout, P_pad), folded BN
        y = jnp.maximum(y, 0.0)                             # ReLU
        # sSE: channel reduction as an MXU matmul (keeps it off the XLU/VPU).
        s_gate = jax.nn.sigmoid(
            jnp.dot(ws_ref[...], y, preferred_element_type=jnp.float32)
            + bs_ref[...])                                  # (1, P_pad)
        # cSE: masked global average pool (junk/pad lanes excluded), also via MXU.
        lane = lax.broadcasted_iota(jnp.int32, (Cout, P_pad), 1)
        valid = jnp.logical_and(lane < PL, (lane % Wq) < Wo)
        y_valid = jnp.where(valid, y, 0.0)
        ones_col = jnp.ones((P_pad, 1), jnp.float32)
        gap = jnp.dot(y_valid, ones_col,
                      preferred_element_type=jnp.float32) * (1.0 / P)   # (Cout, 1)
        h = jnp.dot(w1t_ref[...], gap,
                    preferred_element_type=jnp.float32) + b1_ref[...]   # (Cr, 1)
        h = jnp.clip(h, 0.0, 6.0)                                       # ReLU6
        c_gate = jax.nn.sigmoid(
            jnp.dot(w2t_ref[...], h, preferred_element_type=jnp.float32)
            + b2_ref[...])                                              # (Cout, 1)
        # y*s + y*c == y*(s+c); lane-dense (Cout, P_pad) store.
        out_ref[0] = (y * (s_gate + c_gate)).astype(out_ref.dtype)

    out_pp = pl.pallas_call(
        se_kernel,
        grid=(N,),
        in_specs=[
            pl.BlockSpec((1, Cout, P_pad), lambda n: (n, 0, 0)),
            _full_spec((Cout, 1)), _full_spec((Cout, 1)),
            _full_spec((1, Cout)), _full_spec((1, 1)),
            _full_spec((Cr, Cout)), _full_spec((Cr, 1)),
            _full_spec((Cout, Cr)), _full_spec((Cout, 1)),
        ],
        out_specs=pl.BlockSpec((1, Cout, P_pad), lambda n: (n, 0, 0)),
        out_shape=jax.ShapeDtypeStruct((N, Cout, P_pad), jnp.float32),
        compiler_params=pltpu.CompilerParams(dimension_semantics=("parallel",)),
    )(y_t, scale, bias, ws, bs, w1t, b1, w2t, b2)

    # Channel-major output: drop lane padding / junk columns and reshape straight to
    # NCHW (no output transpose needed).
    out = out_pp[:, :, :PL].reshape(N, Cout, Ho, Wq)[:, :, :, :Wo]
    return out


# --------------------------------------------------------------------------- #
# Pure-JAX reference (NCHW) for correctness check.
# --------------------------------------------------------------------------- #
def reference_forward(x_nchw, params, stride, groups):
    y = lax.conv_general_dilated(
        x_nchw, params["wconv_t"], window_strides=(stride, stride),
        padding="VALID", dimension_numbers=("NCHW", "OIHW", "NCHW"),
        feature_group_count=groups)
    mean = jnp.mean(y, axis=(0, 2, 3), keepdims=True)
    var = jnp.mean((y - mean) ** 2, axis=(0, 2, 3), keepdims=True)
    y = (y - mean) / jnp.sqrt(var + BN_EPS)
    y = y * params["gamma"][None, :, None, None] + params["beta"][None, :, None, None]
    y = jnp.maximum(y, 0.0)
    # sSE
    s = jax.nn.sigmoid(jnp.einsum("nchw,c->nhw", y, params["ws"])[:, None] + params["bs"])
    sse = y * s
    # cSE
    gap = jnp.mean(y, axis=(2, 3))                    # (N, C)
    h = jnp.clip(gap @ params["w1"] + params["b1"], 0.0, 6.0)
    c = jax.nn.sigmoid(h @ params["w2"] + params["b2"])
    cse = y * c[:, :, None, None]
    return sse + cse


def build_params(key, Cin, Cout, K, groups):
    Cr = 1 if Cout // 2 == 0 else Cout // 2
    ks = jax.random.split(key, 9)
    return dict(
        wconv_t=0.1 * jax.random.normal(ks[0], (Cout, Cin // groups, K, K), jnp.float32),
        gamma=1.0 + 0.1 * jax.random.normal(ks[1], (Cout,), jnp.float32),
        beta=0.1 * jax.random.normal(ks[2], (Cout,), jnp.float32),
        ws=0.1 * jax.random.normal(ks[3], (Cout,), jnp.float32),     # sSE pointwise
        bs=0.1 * jax.random.normal(ks[4], (), jnp.float32),
        w1=0.1 * jax.random.normal(ks[5], (Cout, Cr), jnp.float32),  # cSE pointwise_1 (C->Cr), transposed
        b1=0.1 * jax.random.normal(ks[6], (Cr,), jnp.float32),
        w2=0.1 * jax.random.normal(ks[7], (Cr, Cout), jnp.float32),  # cSE pointwise_2 (Cr->C), transposed
        b2=0.1 * jax.random.normal(ks[8], (Cout,), jnp.float32),
    )


if __name__ == "__main__":
    key = jax.random.PRNGKey(0)
    kx, kp = jax.random.split(key)

    # DSConvSE(in_channels=8, out_channels=8, kernel_size=3, stride=2, groups=2)
    N, Cin, H, W = 2, 8, 16, 16
    Cout, K, stride, groups = 8, 3, 2, 2

    x = jax.random.normal(kx, (N, Cin, H, W), jnp.float32)
    params = build_params(kp, Cin, Cout, K, groups)

    out = dsconvse_pallas(x, params, K, stride, groups)
    out = jax.block_until_ready(out)

    ref = jax.block_until_ready(reference_forward(x, params, stride, groups))
    assert out.shape == ref.shape, (out.shape, ref.shape)
    max_err = float(jnp.max(jnp.abs(out - ref)))
    assert max_err < 5e-4, f"max abs error {max_err}"

    print("KERNEL_OK")
</pallas_src>

<mosaic_0001>
module attributes {stable_mosaic.version = 11 : i64} {
  func.func @conv_stats_kernel(%arg0: i32, %arg1: memref<1x264x8xf32, #tpu.memory_space<vmem>>, %arg2: memref<9x8x8xf32, #tpu.memory_space<vmem>>, %arg3: memref<1x8x128xf32, #tpu.memory_space<vmem>>, %arg4: memref<1x8x2xf32, #tpu.memory_space<vmem>>) attributes {dimension_semantics = [#tpu.dimension_semantics<parallel>], iteration_bounds = array<i64: 2>, scalar_prefetch = 0 : i64, scratch_operands = 0 : i64, tpu.core_type = #tpu.core_type<tc>, window_params = [{transform_indices = @transform_0, window_bounds = array<i64: 1, 264, 8>}, {pipeline_mode = #tpu.pipeline_mode<synchronous>, transform_indices = @transform_1, window_bounds = array<i64: 9, 8, 8>}, {transform_indices = @transform_2, window_bounds = array<i64: 1, 8, 128>}, {transform_indices = @transform_3, window_bounds = array<i64: 1, 8, 2>}]} {
    %cst = arith.constant 0.000000e+00 : f32
    %0 = vector.broadcast %cst : f32 to vector<8x56xf32>
    %c0 = arith.constant 0 : index
    %c0_0 = arith.constant 0 : index
    %c0_1 = arith.constant 0 : index
    %1 = vector.load %arg1[%c0, %c0_0, %c0_1] : memref<1x264x8xf32, #tpu.memory_space<vmem>>, vector<1x56x8xf32>
    %2 = vector.shape_cast %1 : vector<1x56x8xf32> to vector<56x8xf32>
    %c0_2 = arith.constant 0 : index
    %c0_3 = arith.constant 0 : index
    %c0_4 = arith.constant 0 : index
    %3 = vector.load %arg2[%c0_2, %c0_3, %c0_4] : memref<9x8x8xf32, #tpu.memory_space<vmem>>, vector<1x8x8xf32>
    %4 = vector.shape_cast %3 : vector<1x8x8xf32> to vector<8x8xf32>
    %cst_5 = arith.constant dense<0.000000e+00> : vector<8x56xf32>
    %5 = tpu.matmul %4, %2, %cst_5 {dimension_numbers = #tpu.dot_dimension_numbers<[1], [1], [0], [0], [0, 0, 1, 0], [], []>} : vector<8x8xf32>, vector<56x8xf32>, vector<8x56xf32> -> vector<8x56xf32>
    %6 = arith.addf %0, %5 : vector<8x56xf32>
    %c0_6 = arith.constant 0 : index
    %c64 = arith.constant 64 : index
    %c0_7 = arith.constant 0 : index
    %7 = vector.load %arg1[%c0_6, %c64, %c0_7] : memref<1x264x8xf32, #tpu.memory_space<vmem>>, vector<1x56x8xf32>
    %8 = vector.shape_cast %7 : vector<1x56x8xf32> to vector<56x8xf32>
    %c1 = arith.constant 1 : index
    %c0_8 = arith.constant 0 : index
    %c0_9 = arith.constant 0 : index
    %9 = vector.load %arg2[%c1, %c0_8, %c0_9] : memref<9x8x8xf32, #tpu.memory_space<vmem>>, vector<1x8x8xf32>
    %10 = vector.shape_cast %9 : vector<1x8x8xf32> to vector<8x8xf32>
    %cst_10 = arith.constant dense<0.000000e+00> : vector<8x56xf32>
    %11 = tpu.matmul %10, %8, %cst_10 {dimension_numbers = #tpu.dot_dimension_numbers<[1], [1], [0], [0], [0, 0, 1, 0], [], []>} : vector<8x8xf32>, vector<56x8xf32>, vector<8x56xf32> -> vector<8x56xf32>
    %12 = arith.addf %6, %11 : vector<8x56xf32>
    %c0_11 = arith.constant 0 : index
    %c1_12 = arith.constant 1 : index
    %c0_13 = arith.constant 0 : index
    %13 = vector.load %arg1[%c0_11, %c1_12, %c0_13] : memref<1x264x8xf32, #tpu.memory_space<vmem>>, vector<1x56x8xf32>
    %14 = vector.shape_cast %13 : vector<1x56x8xf32> to vector<56x8xf32>
    %c2 = arith.constant 2 : index
    %c0_14 = arith.constant 0 : index
    %c0_15 = arith.constant 0 : index
    %15 = vector.load %arg2[%c2, %c0_14, %c0_15] : memref<9x8x8xf32, #tpu.memory_space<vmem>>, vector<1x8x8xf32>
    %16 = vector.shape_cast %15 : vector<1x8x8xf32> to vector<8x8xf32>
    %cst_16 = arith.constant dense<0.000000e+00> : vector<8x56xf32>
    %17 = tpu.matmul %16, %14, %cst_16 {dimension_numbers = #tpu.dot_dimension_numbers<[1], [1], [0], [0], [0, 0, 1, 0], [], []>} : vector<8x8xf32>, vector<56x8xf32>, vector<8x56xf32> -> vector<8x56xf32>
    %18 = arith.addf %12, %17 : vector<8x56xf32>
    %c0_17 = arith.constant 0 : index
    %c128 = arith.constant 128 : index
    %c0_18 = arith.constant 0 : index
    %19 = vector.load %arg1[%c0_17, %c128, %c0_18] : memref<1x264x8xf32, #tpu.memory_space<vmem>>, vector<1x56x8xf32>
    %20 = vector.shape_cast %19 : vector<1x56x8xf32> to vector<56x8xf32>
    %c3 = arith.constant 3 : index
    %c0_19 = arith.constant 0 : index
    %c0_20 = arith.constant 0 : index
    %21 = vector.load %arg2[%c3, %c0_19, %c0_20] : memref<9x8x8xf32, #tpu.memory_space<vmem>>, vector<1x8x8xf32>
    %22 = vector.shape_cast %21 : vector<1x8x8xf32> to vector<8x8xf32>
    %cst_21 = arith.constant dense<0.000000e+00> : vector<8x56xf32>
    %23 = tpu.matmul %22, %20, %cst_21 {dimension_numbers = #tpu.dot_dimension_numbers<[1], [1], [0], [0], [0, 0, 1, 0], [], []>} : vector<8x8xf32>, vector<56x8xf32>, vector<8x56xf32> -> vector<8x56xf32>
    %24 = arith.addf %18, %23 : vector<8x56xf32>
    %c0_22 = arith.constant 0 : index
    %c192 = arith.constant 192 : index
    %c0_23 = arith.constant 0 : index
    %25 = vector.load %arg1[%c0_22, %c192, %c0_23] : memref<1x264x8xf32, #tpu.memory_space<vmem>>, vector<1x56x8xf32>
    %26 = vector.shape_cast %25 : vector<1x56x8xf32> to vector<56x8xf32>
    %c4 = arith.constant 4 : index
    %c0_24 = arith.constant 0 : index
    %c0_25 = arith.constant 0 : index
    %27 = vector.load %arg2[%c4, %c0_24, %c0_25] : memref<9x8x8xf32, #tpu.memory_space<vmem>>, vector<1x8x8xf32>
    %28 = vector.shape_cast %27 : vector<1x8x8xf32> to vector<8x8xf32>
    %cst_26 = arith.constant dense<0.000000e+00> : vector<8x56xf32>
    %29 = tpu.matmul %28, %26, %cst_26 {dimension_numbers = #tpu.dot_dimension_numbers<[1], [1], [0], [0], [0, 0, 1, 0], [], []>} : vector<8x8xf32>, vector<56x8xf32>, vector<8x56xf32> -> vector<8x56xf32>
    %30 = arith.addf %24, %29 : vector<8x56xf32>
    %c0_27 = arith.constant 0 : index
    %c129 = arith.constant 129 : index
    %c0_28 = arith.constant 0 : index
    %31 = vector.load %arg1[%c0_27, %c129, %c0_28] : memref<1x264x8xf32, #tpu.memory_space<vmem>>, vector<1x56x8xf32>
    %32 = vector.shape_cast %31 : vector<1x56x8xf32> to vector<56x8xf32>
    %c5 = arith.constant 5 : index
    %c0_29 = arith.constant 0 : index
    %c0_30 = arith.constant 0 : index
    %33 = vector.load %arg2[%c5, %c0_29, %c0_30] : memref<9x8x8xf32, #tpu.memory_space<vmem>>, vector<1x8x8xf32>
    %34 = vector.shape_cast %33 : vector<1x8x8xf32> to vector<8x8xf32>
    %cst_31 = arith.constant dense<0.000000e+00> : vector<8x56xf32>
    %35 = tpu.matmul %34, %32, %cst_31 {dimension_numbers = #tpu.dot_dimension_numbers<[1], [1], [0], [0], [0, 0, 1, 0], [], []>} : vector<8x8xf32>, vector<56x8xf32>, vector<8x56xf32> -> vector<8x56xf32>
    %36 = arith.addf %30, %35 : vector<8x56xf32>
    %c0_32 = arith.constant 0 : index
    %c8 = arith.constant 8 : index
    %c0_33 = arith.constant 0 : index
    %37 = vector.load %arg1[%c0_32, %c8, %c0_33] : memref<1x264x8xf32, #tpu.memory_space<vmem>>, vector<1x56x8xf32>
    %38 = vector.shape_cast %37 : vector<1x56x8xf32> to vector<56x8xf32>
    %c6 = arith.constant 6 : index
    %c0_34 = arith.constant 0 : index
    %c0_35 = arith.constant 0 : index
    %39 = vector.load %arg2[%c6, %c0_34, %c0_35] : memref<9x8x8xf32, #tpu.memory_space<vmem>>, vector<1x8x8xf32>
    %40 = vector.shape_cast %39 : vector<1x8x8xf32> to vector<8x8xf32>
    %cst_36 = arith.constant dense<0.000000e+00> : vector<8x56xf32>
    %41 = tpu.matmul %40, %38, %cst_36 {dimension_numbers = #tpu.dot_dimension_numbers<[1], [1], [0], [0], [0, 0, 1, 0], [], []>} : vector<8x8xf32>, vector<56x8xf32>, vector<8x56xf32> -> vector<8x56xf32>
    %42 = arith.addf %36, %41 : vector<8x56xf32>
    %c0_37 = arith.constant 0 : index
    %c72 = arith.constant 72 : index
    %c0_38 = arith.constant 0 : index
    %43 = vector.load %arg1[%c0_37, %c72, %c0_38] : memref<1x264x8xf32, #tpu.memory_space<vmem>>, vector<1x56x8xf32>
    %44 = vector.shape_cast %43 : vector<1x56x8xf32> to vector<56x8xf32>
    %c7 = arith.constant 7 : index
    %c0_39 = arith.constant 0 : index
    %c0_40 = arith.constant 0 : index
    %45 = vector.load %arg2[%c7, %c0_39, %c0_40] : memref<9x8x8xf32, #tpu.memory_space<vmem>>, vector<1x8x8xf32>
    %46 = vector.shape_cast %45 : vector<1x8x8xf32> to vector<8x8xf32>
    %cst_41 = arith.constant dense<0.000000e+00> : vector<8x56xf32>
    %47 = tpu.matmul %46, %44, %cst_41 {dimension_numbers = #tpu.dot_dimension_numbers<[1], [1], [0], [0], [0, 0, 1, 0], [], []>} : vector<8x8xf32>, vector<56x8xf32>, vector<8x56xf32> -> vector<8x56xf32>
    %48 = arith.addf %42, %47 : vector<8x56xf32>
    %c0_42 = arith.constant 0 : index
    %c9 = arith.constant 9 : index
    %c0_43 = arith.constant 0 : index
    %49 = vector.load %arg1[%c0_42, %c9, %c0_43] : memref<1x264x8xf32, #tpu.memory_space<vmem>>, vector<1x56x8xf32>
    %50 = vector.shape_cast %49 : vector<1x56x8xf32> to vector<56x8xf32>
    %c8_44 = arith.constant 8 : index
    %c0_45 = arith.constant 0 : index
    %c0_46 = arith.constant 0 : index
    %51 = vector.load %arg2[%c8_44, %c0_45, %c0_46] : memref<9x8x8xf32, #tpu.memory_space<vmem>>, vector<1x8x8xf32>
    %52 = vector.shape_cast %51 : vector<1x8x8xf32> to vector<8x8xf32>
    %cst_47 = arith.constant dense<0.000000e+00> : vector<8x56xf32>
    %53 = tpu.matmul %52, %50, %cst_47 {dimension_numbers = #tpu.dot_dimension_numbers<[1], [1], [0], [0], [0, 0, 1, 0], [], []>} : vector<8x8xf32>, vector<56x8xf32>, vector<8x56xf32> -> vector<8x56xf32>
    %54 = arith.addf %48, %53 : vector<8x56xf32>
    %55 = tpu.iota {dimensions = array<i32: 1>} : vector<8x56xi32>
    %c8_i32 = arith.constant 8 : i32
    %c0_i32 = arith.constant 0 : i32
    %56 = arith.cmpi eq, %c8_i32, %c0_i32 : i32
    %c1_i32 = arith.constant 1 : i32
    %57 = arith.select %56, %c1_i32, %c8_i32 : i32
    %58 = vector.broadcast %57 : i32 to vector<8x56xi32>
    %59 = arith.remsi %55, %58 : vector<8x56xi32>
    %c0_i32_48 = arith.constant 0 : i32
    %60 = vector.broadcast %c0_i32_48 : i32 to vector<8x56xi32>
    %61 = arith.cmpi ne, %59, %60 : vector<8x56xi32>
    %c0_i32_49 = arith.constant 0 : i32
    %62 = vector.broadcast %c0_i32_49 : i32 to vector<8x56xi32>
    %63 = arith.cmpi slt, %59, %62 : vector<8x56xi32>
    %c0_i32_50 = arith.constant 0 : i32
    %64 = arith.cmpi slt, %57, %c0_i32_50 : i32
    %65 = vector.broadcast %64 : i1 to vector<8x56xi1>
    %66 = vector.broadcast %65 : vector<8x56xi1> to vector<8x56xi1>
    %67 = arith.xori %63, %66 : vector<8x56xi1>
    %68 = arith.andi %67, %61 : vector<8x56xi1>
    %69 = vector.broadcast %57 : i32 to vector<8x56xi32>
    %70 = arith.addi %59, %69 : vector<8x56xi32>
    %71 = arith.select %68, %70, %59 : vector<8x56xi1>, vector<8x56xi32>
    %c7_i32 = arith.constant 7 : i32
    %72 = vector.broadcast %c7_i32 : i32 to vector<8x56xi32>
    %73 = arith.cmpi slt, %71, %72 : vector<8x56xi32>
    %cst_51 = arith.constant 0.000000e+00 : f32
    %74 = vector.broadcast %cst_51 : f32 to vector<8x56xf32>
    %75 = arith.select %73, %54, %74 : vector<8x56xi1>, vector<8x56xf32>
    %cst_52 = arith.constant dense<0.000000e+00> : vector<8xf32>
    %76 = vector.multi_reduction <add>, %75, %cst_52 [1] : vector<8x56xf32> to vector<8xf32>
    %77 = vector.shape_cast %76 : vector<8xf32> to vector<8x1xf32>
    %78 = arith.mulf %75, %75 : vector<8x56xf32>
    %cst_53 = arith.constant dense<0.000000e+00> : vector<8xf32>
    %79 = vector.multi_reduction <add>, %78, %cst_53 [1] : vector<8x56xf32> to vector<8xf32>
    %80 = vector.shape_cast %79 : vector<8xf32> to vector<8x1xf32>
    %81 = tpu.concatenate %77, %80 in 1 : vector<8x1xf32>, vector<8x1xf32> -> vector<8x2xf32>
    %c0_54 = arith.constant 0 : index
    %c0_55 = arith.constant 0 : index
    %c0_56 = arith.constant 0 : index
    %82 = vector.load %arg4[%c0_54, %c0_55, %c0_56] : memref<1x8x2xf32, #tpu.memory_space<vmem>>, vector<1x8x2xf32>
    %83 = vector.shape_cast %82 : vector<1x8x2xf32> to vector<8x2xf32>
    %84 = vector.shape_cast %81 : vector<8x2xf32> to vector<1x8x2xf32>
    tpu.vector_store %arg4[%c0_54, %c0_55, %c0_56], %84 {strides = array<i32>} : memref<1x8x2xf32, #tpu.memory_space<vmem>>, vector<1x8x2xf32>,
    %cst_57 = arith.constant 0.000000e+00 : f32
    %85 = vector.broadcast %cst_57 : f32 to vector<8x72xf32>
    %86 = tpu.concatenate %75, %85 in 1 : vector<8x56xf32>, vector<8x72xf32> -> vector<8x128xf32>
    %c0_58 = arith.constant 0 : index
    %c0_59 = arith.constant 0 : index
    %c0_60 = arith.constant 0 : index
    %87 = vector.load %arg3[%c0_58, %c0_59, %c0_60] : memref<1x8x128xf32, #tpu.memory_space<vmem>>, vector<1x8x128xf32>
    %88 = vector.shape_cast %87 : vector<1x8x128xf32> to vector<8x128xf32>
    %89 = vector.shape_cast %86 : vector<8x128xf32> to vector<1x8x128xf32>
    tpu.vector_store %arg3[%c0_58, %c0_59, %c0_60], %89 {strides = array<i32>} : memref<1x8x128xf32, #tpu.memory_space<vmem>>, vector<1x8x128xf32>,
    return
  }
  func.func @transform_0(%arg0: i32) -> (i32, i32, i32) {
    %c0_i32 = arith.constant 0 : i32
    %c0_i32_0 = arith.constant 0 : i32
    %c0_i32_1 = arith.constant 0 : i32
    return %arg0, %c0_i32, %c0_i32_0 : i32, i32, i32
  }
  func.func @transform_1(%arg0: i32) -> (i32, i32, i32) {
    %c0_i32 = arith.constant 0 : i32
    %c0_i32_0 = arith.constant 0 : i32
    %c0_i32_1 = arith.constant 0 : i32
    %c0_i32_2 = arith.constant 0 : i32
    return %c0_i32, %c0_i32_0, %c0_i32_1 : i32, i32, i32
  }
  func.func @transform_2(%arg0: i32) -> (i32, i32, i32) {
    %c0_i32 = arith.constant 0 : i32
    %c0_i32_0 = arith.constant 0 : i32
    %c0_i32_1 = arith.constant 0 : i32
    return %arg0, %c0_i32, %c0_i32_0 : i32, i32, i32
  }
  func.func @transform_3(%arg0: i32) -> (i32, i32, i32) {
    %c0_i32 = arith.constant 0 : i32
    %c0_i32_0 = arith.constant 0 : i32
    %c0_i32_1 = arith.constant 0 : i32
    return %arg0, %c0_i32, %c0_i32_0 : i32, i32, i32
  }
}

</mosaic_0001>

<llo_original>
// kernel: tpu_custom_call.1
$region0: #{tpu_custom_call.1}
  #allocation0 [shape = 'u32[]', space=smem, size = 0x4, offset = 0x4, fixed_abs, tag = 'smem constant byte address 0x4 - core index']
  #allocation1 [shape = 'u32[144,128]{1,0:T(1,128)}', space=vmem, size = 0x12000, scoped, tag = 'internal scratch']
  %s0 = inlined_call_operand.vmem [shape: f32[2,264,8], index: 0, kind: input, shape index: {}]
  %s1 = inlined_call_operand.vmem [shape: f32[9,8,8], index: 1, kind: input, shape index: {}]
  %s2 = inlined_call_operand.hbm [shape: f32[2,8,128], index: 2, kind: output, shape index: {0}]
  %s3 = inlined_call_operand.vmem [shape: f32[2,8,2], index: 3, kind: output, shape index: {1}]
  %4 = xla_tuple %s2, %s3
  %s5 = sld [smem:[#allocation0]]
  $region49: #{tpu_custom_call.1} parent=0
    _
  %s7 = ssub.s32 1, %s5
  %s8 = scalar_select 0, %s7, %s5
  $region1: #{tpu_custom_call.1} parent=0
    #allocation2 [shape = 'u8[8192]{0}', space=vmem, size = 0x2000, scoped, tag = 'output window, operand 0']
    #allocation3 [shape = 's32[2]{0}', space=sflag, size = 0x8, scoped, tag = 'scoped memory for tpu_custom_call.1']
    %9 = vsyncpa [#allocation3], 0
    %s10 = scalar_lea.sflag [#allocation3], 1
    %11 = vsyncpa %s10, 0
    loop: start=0, step=1, limit=4
    $region2: #{tpu_custom_call.1} parent=1 // loop_pre_header
      _
    $region3: #{tpu_custom_call.1} parent=1 // loop_header
      %s13 = sphi 0, %s17
      %p14 = scmp.ge.s32.totalorder %s13, 4
      %s23 = sphi 0, %s25
      %s26 = sphi 0, %s23
      %s27 = sphi 0, %s26
      %s43 = sphi 0, %s27
      %s47 = sphi 0, %s47
      %s49 = sphi 0, %s47
      %s50 = sphi 0, %s49
      %s64 = sphi 0, %s50
      %s70 = sphi 0, %s72
      %s73 = sphi 0, %s70
      %s74 = sphi 0, %s73
      %s90 = sphi 0, %s74
      %s96 = sphi 0, %s98
      %s99 = sphi 0, %s96
      %s100 = sphi 0, %s99
      %s116 = sphi 0, %s100
    $region4: #{tpu_custom_call.1} parent=1 // loop_header_branch
      %16 = sbr.rel (%p14) target = $region8
    $region5: #{tpu_custom_call.1} parent=1 // loop_body
      %s18 = ssub.s32 %s13, 1
      %s19 = ssub.s32 %s13, 2
      %s20 = sadd.s32 %s13, 1
      %s21 = ssub.s32 %s13, %s20
      %p22 = scmp.eq.s32.totalorder %s21, 0
      %s24 = sadd.s32 %s23, 1
      %s25 = scalar_select %p22, %s23, %s24
      %p28 = pneg %p22
      %p29 = scmp.eq.s32.totalorder %s13, 1
      %p30 = por %p28, %p29
      %p31 = scmp.ne.s32.totalorder %s23, %s26
      %p32 = scmp.eq.s32.totalorder %s13, 0
      %p33 = por %p31, %p32
      %p34 = scmp.ne.s32.totalorder %s23, %s26
      %p35 = scmp.eq.s32.totalorder %s18, 1
      %p36 = por %p34, %p35
      %p37 = scmp.ne.s32.totalorder %s26, %s27
      %p38 = scmp.eq.s32.totalorder %s18, 0
      %p39 = por %p37, %p38
      %p40 = scmp.ne.s32.totalorder %s26, %s27
      %p41 = scmp.eq.s32.totalorder %s19, 1
      %p42 = por %p40, %p41
      %p44 = scmp.ne.s32.totalorder %s27, %s43
      %p45 = scmp.eq.s32.totalorder %s19, 0
      %p46 = por %p44, %p45
      %s48 = sadd.s32 %s47, 1
      %p51 = scmp.eq.s32.totalorder %s13, 1
      %p52 = scmp.ne.s32.totalorder %s47, %s49
      %p53 = scmp.eq.s32.totalorder %s13, 0
      %p54 = por %p52, %p53
      %p55 = scmp.ne.s32.totalorder %s47, %s49
      %p56 = scmp.eq.s32.totalorder %s18, 1
      %p57 = por %p55, %p56
      %p58 = scmp.ne.s32.totalorder %s49, %s50
      %p59 = scmp.eq.s32.totalorder %s18, 0
      %p60 = por %p58, %p59
      %p61 = scmp.ne.s32.totalorder %s49, %s50
      %p62 = scmp.eq.s32.totalorder %s19, 1
      %p63 = por %p61, %p62
      %p65 = scmp.ne.s32.totalorder %s50, %s64
      %p66 = scmp.eq.s32.totalorder %s19, 0
      %p67 = por %p65, %p66
      %s68 = ssub.s32 %s13, %s20
      %p69 = scmp.eq.s32.totalorder %s68, 0
      %s71 = sadd.s32 %s70, 1
      %s72 = scalar_select %p69, %s70, %s71
      %p75 = pneg %p69
      %p76 = scmp.eq.s32.totalorder %s13, 1
      %p77 = por %p75, %p76
      %p78 = scmp.ne.s32.totalorder %s70, %s73
      %p79 = scmp.eq.s32.totalorder %s13, 0
      %p80 = por %p78, %p79
      %p81 = scmp.ne.s32.totalorder %s70, %s73
      %p82 = scmp.eq.s32.totalorder %s18, 1
      %p83 = por %p81, %p82
      %p84 = scmp.ne.s32.totalorder %s73, %s74
      %p85 = scmp.eq.s32.totalorder %s18, 0
      %p86 = por %p84, %p85
      %p87 = scmp.ne.s32.totalorder %s73, %s74
      %p88 = scmp.eq.s32.totalorder %s19, 1
      %p89 = por %p87, %p88
      %p91 = scmp.ne.s32.totalorder %s74, %s90
      %p92 = scmp.eq.s32.totalorder %s19, 0
      %p93 = por %p91, %p92
      %s94 = ssub.s32 %s13, %s20
      %p95 = scmp.eq.s32.totalorder %s94, 0
      %s97 = sadd.s32 %s96, 1
      %s98 = scalar_select %p95, %s96, %s97
      %p101 = pneg %p95
      %p102 = scmp.eq.s32.totalorder %s13, 1
      %p103 = por %p101, %p102
      %p104 = scmp.ne.s32.totalorder %s96, %s99
      %p105 = scmp.eq.s32.totalorder %s13, 0
      %p106 = por %p104, %p105
      %p107 = scmp.ne.s32.totalorder %s96, %s99
      %p108 = scmp.eq.s32.totalorder %s18, 1
      %p109 = por %p107, %p108
      %p110 = scmp.ne.s32.totalorder %s99, %s100
      %p111 = scmp.eq.s32.totalorder %s18, 0
      %p112 = por %p110, %p111
      %p113 = scmp.ne.s32.totalorder %s99, %s100
      %p114 = scmp.eq.s32.totalorder %s19, 1
      %p115 = por %p113, %p114
      %p117 = scmp.ne.s32.totalorder %s100, %s116
      %p118 = scmp.eq.s32.totalorder %s19, 0
      %p119 = por %p117, %p118
      %p120 = scmp.le.s32.totalorder 1, %s13
      %p121 = scmp.lt.s32.totalorder %s13, 3
      %p122 = pnand %p120, %p121
      %p123 = pneg %p122
      // Predicated region
      $region9: #{tpu_custom_call.1} parent=5 // pred_check
        _
      $region10: #{tpu_custom_call.1} parent=5 // pred_check_branch
        %125 = sbr.rel (%p122) target = $region12
      $region11: #{tpu_custom_call.1} parent=5 // pred_region
        %s126 = ssub.s32 %s13, 1
        // Predicated region
        $region13: #{tpu_custom_call.1} parent=11 // pred_check
          %p127 = pneg %p60
        $region14: #{tpu_custom_call.1} parent=11 // pred_check_branch
          %129 = sbr.rel (%p127) target = $region16
        $region15: #{tpu_custom_call.1} parent=11 // pred_region
          _
        $region16: #{tpu_custom_call.1} parent=11 // pred_fallthru
          _
      $region12: #{tpu_custom_call.1} parent=5 // pred_fallthru
        _
      %p130 = scmp.lt.s32.totalorder %s13, 2
      // Predicated region
      $region17: #{tpu_custom_call.1} parent=5 // pred_check
        %p131 = pneg %p130
      $region18: #{tpu_custom_call.1} parent=5 // pred_check_branch
        %133 = sbr.rel (%p131) target = $region20
      $region19: #{tpu_custom_call.1} parent=5 // pred_region
        // Predicated region
        $region21: #{tpu_custom_call.1} parent=19 // pred_check
          %p134 = pneg %p33
        $region22: #{tpu_custom_call.1} parent=19 // pred_check_branch
          %136 = sbr.rel (%p134) target = $region24
        $region23: #{tpu_custom_call.1} parent=19 // pred_region
          %p137 = scmp.lt.s32.totalorder %s13, 1
          %s138 = scalar_select %p137, %s13, 1
          %s139 = smul.addr %s138, 33
          %s140 = smul.addr %s139, 8
          %s141 = scalar_lea.vmem %s0, %s140
        $region24: #{tpu_custom_call.1} parent=19 // pred_fallthru
          _
      $region20: #{tpu_custom_call.1} parent=5 // pred_fallthru
        _
      %p142 = scmp.le.s32.totalorder 1, %s13
      %p143 = scmp.lt.s32.totalorder %s13, 3
      %p144 = pnand %p142, %p143
      %p145 = pneg %p144
      // Predicated region
      $region25: #{tpu_custom_call.1} parent=5 // pred_check
        _
      $region26: #{tpu_custom_call.1} parent=5 // pred_check_branch
        %147 = sbr.rel (%p144) target = $region28
      $region27: #{tpu_custom_call.1} parent=5 // pred_region
        %s148 = ssub.s32 %s13, 1
        %p149 = scmp.lt.s32.totalorder %s18, 1
        %s150 = scalar_select %p149, %s18, 1
        %s151 = smul.addr %s150, 33
        %s152 = smul.addr %s151, 8
        %s153 = scalar_lea.vmem %s0, %s152
        %p154 = pneg %p39
        %p155 = pneg %p36
        %p156 = pneg %p60
        %p157 = pneg %p57
        %p158 = pneg %p86
        %p159 = pneg %p83
        %s160 = sand.u32 %s73, 1
        %s161 = scalar_lea.sflag [#allocation3], %s160
        %s162 = sand.u32 %s73, 1
        %s163 = smul.addr %s162, 8
        %s164 = scalar_lea.vmem [#allocation2], %s163
        %p165 = pneg %p112
        %p166 = pneg %p109
        %p167 = scmp.lt.s32.totalorder %s18, 1
        %s168 = scalar_select %p167, %s18, 1
        %s169 = smul.addr %s168, 8
        %s170 = scalar_lea.vmem %s3, %s169
        %p171 = scmp.lt.s32.totalorder %s18, 1
        %s172 = scalar_select %p171, %s18, 1
        %s173 = smul.addr %s172, 33
        %s174 = smul.addr %s173, 8
        %s175 = scalar_lea.vmem %s0, %s174
        %p176 = scmp.lt.s32.totalorder %s18, 1
        %s177 = scalar_select %p176, %s18, 1
        %s178 = smul.addr %s177, 8
        %s179 = scalar_lea.vmem %s3, %s178
        %v180 = vld [vmem:[%s175] sm:$0xff]
        %v181 = vld [vmem:[%s175 + $0x8] sm:$0xff]
        %v182 = vld [vmem:[%s175 + $0x10] sm:$0xff]
        %v183 = vld [vmem:[%s175 + $0x18] sm:$0xff]
        %v184 = vld [vmem:[%s175 + $0x20] sm:$0xff]
        %v185 = vld [vmem:[%s175 + $0x28] sm:$0xff]
        %v186 = vld [vmem:[%s175 + $0x30] sm:$0xff]
        %v187 = vld [vmem:[%s1] sm:$0xff]
        %v188 = vld [vmem:[%s175 + $0x40] sm:$0xff]
        %v189 = vld [vmem:[%s175 + $0x48] sm:$0xff]
        %v190 = vld [vmem:[%s175 + $0x50] sm:$0xff]
        %v191 = vld [vmem:[%s175 + $0x58] sm:$0xff]
        %v192 = vld [vmem:[%s175 + $0x60] sm:$0xff]
        %v193 = vld [vmem:[%s175 + $0x68] sm:$0xff]
        %v194 = vld [vmem:[%s175 + $0x70] sm:$0xff]
        %s195 = scalar_lea.vmem %s1, 8
        %v196 = vld [vmem:[%s195] sm:$0xff]
        %vm197 = vcmask 64512
        %v199 = vsel %vm197, %v196, 0
        %v202 = vsel %vm197, %v188, 0
        %v205 = vsel %vm197, %v189, 0
        %v208 = vsel %vm197, %v190, 0
        %v211 = vsel %vm197, %v191, 0
        %v214 = vsel %vm197, %v192, 0
        %v217 = vsel %vm197, %v193, 0
        %v220 = vsel %vm197, %v194, 0
        %222 = vmatprep.subr.mxu0 0.0
        %223 = vmatpush1.xpose.msra.mxu0 %v202
        %224 = vmatprep.subr.mxu0 0.0
        %225 = vmatpush1.xpose.msra.mxu0 %v205
        %226 = vmatprep.subr.mxu0 0.0
        %227 = vmatpush1.xpose.msra.mxu0 %v208
        %228 = vmatprep.subr.mxu0 0.0
        %229 = vmatpush1.xpose.msra.mxu0 %v211
        %230 = vmatprep.subr.mxu0 0.0
        %231 = vmatpush1.xpose.msra.mxu0 %v214
        %232 = vmatprep.subr.mxu0 0.0
        %233 = vmatpush1.xpose.msra.mxu0 %v217
        %234 = vmatprep.subr.mxu0 0.0
        %235 = vmatpush1.xpose.msra.mxu0 %v220
        %236 = vmatprep.subr.mxu0 0.0
        %237 = vmatpush1.xpose.msra.mxu0 0.0
        %238 = vmatprep.subr.mxu0 0.0
        %239 = vmatpush1.xpose.msra.mxu0 0.0
        %240 = vmatprep.subr.mxu0 0.0
        %241 = vmatpush1.xpose.msra.mxu0 0.0
        %242 = vmatprep.subr.mxu0 0.0
        %243 = vmatpush1.xpose.msra.mxu0 0.0
        %244 = vmatprep.subr.mxu0 0.0
        %245 = vmatpush1.xpose.msra.mxu0 0.0
        %246 = vmatprep.subr.mxu0 0.0
        %247 = vmatpush1.xpose.msra.mxu0 0.0
        %248 = vmatprep.subr.mxu0 0.0
        %249 = vmatpush1.xpose.msra.mxu0 0.0
        %250 = vmatprep.subr.mxu0 0.0
        %251 = vmatpush1.xpose.msra.mxu0 0.0
        %252 = vmatprep.subr.mxu0 0.0
        %253 = vmatpush1.xpose.msra.mxu0 0.0
        %254 = vmatprep.subr.mxu0 0.0
        %255 = vmatpush1.xpose.msra.mxu0 0.0
        %256 = vmatprep.subr.mxu0 0.0
        %257 = vmatpush1.xpose.msra.mxu0 0.0
        %258 = vmatprep.subr.mxu0 0.0
        %259 = vmatpush1.xpose.msra.mxu0 0.0
        %260 = vmatprep.subr.mxu0 0.0
        %261 = vmatpush1.xpose.msra.mxu0 0.0
        %262 = vmatprep.subr.mxu0 0.0
        %263 = vmatpush1.xpose.msra.mxu0 0.0
        %264 = vmatprep.subr.mxu0 0.0
        %265 = vmatpush1.xpose.msra.mxu0 0.0
        %266 = vmatprep.subr.mxu0 0.0
        %267 = vmatpush1.xpose.msra.mxu0 0.0
        %268 = vmatprep.subr.mxu0 0.0
        %269 = vmatpush1.xpose.msra.mxu0 0.0
        %270 = vmatprep.subr.mxu0 0.0
        %271 = vmatpush1.xpose.msra.mxu0 0.0
        %272 = vmatprep.subr.mxu0 0.0
        %273 = vmatpush1.xpose.msra.mxu0 0.0
        %274 = vmatprep.subr.mxu0 0.0
        %275 = vmatpush1.xpose.msra.mxu0 0.0
        %276 = vmatprep.subr.mxu0 0.0
        %277 = vmatpush1.xpose.msra.mxu0 0.0
        %278 = vmatprep.subr.mxu0 0.0
        %279 = vmatpush1.xpose.msra.mxu0 0.0
        %280 = vmatprep.subr.mxu0 0.0
        %281 = vmatpush1.xpose.msra.mxu0 0.0
        %282 = vmatprep.subr.mxu0 0.0
        %283 = vmatpush1.xpose.msra.mxu0 0.0
        %284 = vmatprep.subr.mxu0 0.0
        %285 = vmatpush1.xpose.msra.mxu0 0.0
        %286 = vmatprep.mubr.f32.mxu0 0.0
        %287 = vmatmul.mubr.f32.gmra.mrb[0].mxu0 %v199
        %v288 = vpop.f32.mrb[0].mxu0
        %v289 = vadd.f32 0.0, %v288
        %v290 = vpop.f32.mrb[0].mxu0
        %291 = vdwg.mxu0
        %v293 = vsel %vm197, %v187, 0
        %v296 = vsel %vm197, %v180, 0
        %v299 = vsel %vm197, %v181, 0
        %v302 = vsel %vm197, %v182, 0
        %v305 = vsel %vm197, %v183, 0
        %v308 = vsel %vm197, %v184, 0
        %v311 = vsel %vm197, %v185, 0
        %v314 = vsel %vm197, %v186, 0
        %316 = vmatprep.subr.mxu0 0.0
        %317 = vmatpush1.xpose.msra.mxu0 %v296
        %318 = vmatprep.subr.mxu0 0.0
        %319 = vmatpush1.xpose.msra.mxu0 %v299
        %320 = vmatprep.subr.mxu0 0.0
        %321 = vmatpush1.xpose.msra.mxu0 %v302
        %322 = vmatprep.subr.mxu0 0.0
        %323 = vmatpush1.xpose.msra.mxu0 %v305
        %324 = vmatprep.subr.mxu0 0.0
        %325 = vmatpush1.xpose.msra.mxu0 %v308
        %326 = vmatprep.subr.mxu0 0.0
        %327 = vmatpush1.xpose.msra.mxu0 %v311
        %328 = vmatprep.subr.mxu0 0.0
        %329 = vmatpush1.xpose.msra.mxu0 %v314
        %330 = vmatprep.subr.mxu0 0.0
        %331 = vmatpush1.xpose.msra.mxu0 0.0
        %332 = vmatprep.subr.mxu0 0.0
        %333 = vmatpush1.xpose.msra.mxu0 0.0
        %334 = vmatprep.subr.mxu0 0.0
        %335 = vmatpush1.xpose.msra.mxu0 0.0
        %336 = vmatprep.subr.mxu0 0.0
        %337 = vmatpush1.xpose.msra.mxu0 0.0
        %338 = vmatprep.subr.mxu0 0.0
        %339 = vmatpush1.xpose.msra.mxu0 0.0
        %340 = vmatprep.subr.mxu0 0.0
        %341 = vmatpush1.xpose.msra.mxu0 0.0
        %342 = vmatprep.subr.mxu0 0.0
        %343 = vmatpush1.xpose.msra.mxu0 0.0
        %344 = vmatprep.subr.mxu0 0.0
        %345 = vmatpush1.xpose.msra.mxu0 0.0
        %346 = vmatprep.subr.mxu0 0.0
        %347 = vmatpush1.xpose.msra.mxu0 0.0
        %348 = vmatprep.subr.mxu0 0.0
        %349 = vmatpush1.xpose.msra.mxu0 0.0
        %350 = vmatprep.subr.mxu0 0.0
        %351 = vmatpush1.xpose.msra.mxu0 0.0
        %352 = vmatprep.subr.mxu0 0.0
        %353 = vmatpush1.xpose.msra.mxu0 0.0
        %354 = vmatprep.subr.mxu0 0.0
        %355 = vmatpush1.xpose.msra.mxu0 0.0
        %356 = vmatprep.subr.mxu0 0.0
        %357 = vmatpush1.xpose.msra.mxu0 0.0
        %358 = vmatprep.subr.mxu0 0.0
        %359 = vmatpush1.xpose.msra.mxu0 0.0
        %360 = vmatprep.subr.mxu0 0.0
        %361 = vmatpush1.xpose.msra.mxu0 0.0
        %362 = vmatprep.subr.mxu0 0.0
        %363 = vmatpush1.xpose.msra.mxu0 0.0
        %364 = vmatprep.subr.mxu0 0.0
        %365 = vmatpush1.xpose.msra.mxu0 0.0
        %366 = vmatprep.subr.mxu0 0.0
        %367 = vmatpush1.xpose.msra.mxu0 0.0
        %368 = vmatprep.subr.mxu0 0.0
        %369 = vmatpush1.xpose.msra.mxu0 0.0
        %370 = vmatprep.subr.mxu0 0.0
        %371 = vmatpush1.xpose.msra.mxu0 0.0
        %372 = vmatprep.subr.mxu0 0.0
        %373 = vmatpush1.xpose.msra.mxu0 0.0
        %374 = vmatprep.subr.mxu0 0.0
        %375 = vmatpush1.xpose.msra.mxu0 0.0
        %376 = vmatprep.subr.mxu0 0.0
        %377 = vmatpush1.xpose.msra.mxu0 0.0
        %378 = vmatprep.subr.mxu0 0.0
        %379 = vmatpush1.xpose.msra.mxu0 0.0
        %380 = vmatprep.mubr.f32.mxu0 0.0
        %381 = vmatmul.mubr.f32.gmra.mrb[0].mxu0 %v293
        %v382 = vpop.f32.mrb[0].mxu0
        %v383 = vadd.f32 %v289, %v382
        %v384 = vpop.f32.mrb[0].mxu0
        %385 = vdwg.mxu0
        %v386 = vld [vmem:[%s175 + $0x1] sm:$0xff]
        %v387 = vld [vmem:[%s175 + $0x9] sm:$0xff]
        %v388 = vld [vmem:[%s175 + $0x11] sm:$0xff]
        %v389 = vld [vmem:[%s175 + $0x19] sm:$0xff]
        %v390 = vld [vmem:[%s175 + $0x21] sm:$0xff]
        %v391 = vld [vmem:[%s175 + $0x29] sm:$0xff]
        %v392 = vld [vmem:[%s175 + $0x31] sm:$0xff]
        %s393 = scalar_lea.vmem %s1, 16
        %v394 = vld [vmem:[%s393] sm:$0xff]
        %v396 = vsel %vm197, %v394, 0
        %v399 = vsel %vm197, %v386, 0
        %v402 = vsel %vm197, %v387, 0
        %v405 = vsel %vm197, %v388, 0
        %v408 = vsel %vm197, %v389, 0
        %v411 = vsel %vm197, %v390, 0
        %v414 = vsel %vm197, %v391, 0
        %v417 = vsel %vm197, %v392, 0
        %419 = vmatprep.subr.mxu0 0.0
        %420 = vmatpush1.xpose.msra.mxu0 %v399
        %421 = vmatprep.subr.mxu0 0.0
        %422 = vmatpush1.xpose.msra.mxu0 %v402
        %423 = vmatprep.subr.mxu0 0.0
        %424 = vmatpush1.xpose.msra.mxu0 %v405
        %425 = vmatprep.subr.mxu0 0.0
        %426 = vmatpush1.xpose.msra.mxu0 %v408
        %427 = vmatprep.subr.mxu0 0.0
        %428 = vmatpush1.xpose.msra.mxu0 %v411
        %429 = vmatprep.subr.mxu0 0.0
        %430 = vmatpush1.xpose.msra.mxu0 %v414
        %431 = vmatprep.subr.mxu0 0.0
        %432 = vmatpush1.xpose.msra.mxu0 %v417
        %433 = vmatprep.subr.mxu0 0.0
        %434 = vmatpush1.xpose.msra.mxu0 0.0
        %435 = vmatprep.subr.mxu0 0.0
        %436 = vmatpush1.xpose.msra.mxu0 0.0
        %437 = vmatprep.subr.mxu0 0.0
        %438 = vmatpush1.xpose.msra.mxu0 0.0
        %439 = vmatprep.subr.mxu0 0.0
        %440 = vmatpush1.xpose.msra.mxu0 0.0
        %441 = vmatprep.subr.mxu0 0.0
        %442 = vmatpush1.xpose.msra.mxu0 0.0
        %443 = vmatprep.subr.mxu0 0.0
        %444 = vmatpush1.xpose.msra.mxu0 0.0
        %445 = vmatprep.subr.mxu0 0.0
        %446 = vmatpush1.xpose.msra.mxu0 0.0
        %447 = vmatprep.subr.mxu0 0.0
        %448 = vmatpush1.xpose.msra.mxu0 0.0
        %449 = vmatprep.subr.mxu0 0.0
        %450 = vmatpush1.xpose.msra.mxu0 0.0
        %451 = vmatprep.subr.mxu0 0.0
        %452 = vmatpush1.xpose.msra.mxu0 0.0
        %453 = vmatprep.subr.mxu0 0.0
        %454 = vmatpush1.xpose.msra.mxu0 0.0
        %455 = vmatprep.subr.mxu0 0.0
        %456 = vmatpush1.xpose.msra.mxu0 0.0
        %457 = vmatprep.subr.mxu0 0.0
        %458 = vmatpush1.xpose.msra.mxu0 0.0
        %459 = vmatprep.subr.mxu0 0.0
        %460 = vmatpush1.xpose.msra.mxu0 0.0
        %461 = vmatprep.subr.mxu0 0.0
        %462 = vmatpush1.xpose.msra.mxu0 0.0
        %463 = vmatprep.subr.mxu0 0.0
        %464 = vmatpush1.xpose.msra.mxu0 0.0
        %465 = vmatprep.subr.mxu0 0.0
        %466 = vmatpush1.xpose.msra.mxu0 0.0
        %467 = vmatprep.subr.mxu0 0.0
        %468 = vmatpush1.xpose.msra.mxu0 0.0
        %469 = vmatprep.subr.mxu0 0.0
        %470 = vmatpush1.xpose.msra.mxu0 0.0
        %471 = vmatprep.subr.mxu0 0.0
        %472 = vmatpush1.xpose.msra.mxu0 0.0
        %473 = vmatprep.subr.mxu0 0.0
        %474 = vmatpush1.xpose.msra.mxu0 0.0
        %475 = vmatprep.subr.mxu0 0.0
        %476 = vmatpush1.xpose.msra.mxu0 0.0
        %477 = vmatprep.subr.mxu0 0.0
        %478 = vmatpush1.xpose.msra.mxu0 0.0
        %479 = vmatprep.subr.mxu0 0.0
        %480 = vmatpush1.xpose.msra.mxu0 0.0
        %481 = vmatprep.subr.mxu0 0.0
        %482 = vmatpush1.xpose.msra.mxu0 0.0
        %483 = vmatprep.mubr.f32.mxu0 0.0
        %484 = vmatmul.mubr.f32.gmra.mrb[0].mxu0 %v396
        %v485 = vpop.f32.mrb[0].mxu0
        %v486 = vadd.f32 0.0, %v485
        %v487 = vpop.f32.mrb[0].mxu0
        %488 = vdwg.mxu0
        %v489 = vadd.f32 %v383, %v486
        %v490 = vld [vmem:[%s175 + $0x80] sm:$0xff]
        %v491 = vld [vmem:[%s175 + $0x88] sm:$0xff]
        %v492 = vld [vmem:[%s175 + $0x90] sm:$0xff]
        %v493 = vld [vmem:[%s175 + $0x98] sm:$0xff]
        %v494 = vld [vmem:[%s175 + $0xa0] sm:$0xff]
        %v495 = vld [vmem:[%s175 + $0xa8] sm:$0xff]
        %v496 = vld [vmem:[%s175 + $0xb0] sm:$0xff]
        %s497 = scalar_lea.vmem %s1, 24
        %v498 = vld [vmem:[%s497] sm:$0xff]
        %v500 = vsel %vm197, %v498, 0
        %v503 = vsel %vm197, %v490, 0
        %v506 = vsel %vm197, %v491, 0
        %v509 = vsel %vm197, %v492, 0
        %v512 = vsel %vm197, %v493, 0
        %v515 = vsel %vm197, %v494, 0
        %v518 = vsel %vm197, %v495, 0
        %v521 = vsel %vm197, %v496, 0
        %523 = vmatprep.subr.mxu0 0.0
        %524 = vmatpush1.xpose.msra.mxu0 %v503
        %525 = vmatprep.subr.mxu0 0.0
        %526 = vmatpush1.xpose.msra.mxu0 %v506
        %527 = vmatprep.subr.mxu0 0.0
        %528 = vmatpush1.xpose.msra.mxu0 %v509
        %529 = vmatprep.subr.mxu0 0.0
        %530 = vmatpush1.xpose.msra.mxu0 %v512
        %531 = vmatprep.subr.mxu0 0.0
        %532 = vmatpush1.xpose.msra.mxu0 %v515
        %533 = vmatprep.subr.mxu0 0.0
        %534 = vmatpush1.xpose.msra.mxu0 %v518
        %535 = vmatprep.subr.mxu0 0.0
        %536 = vmatpush1.xpose.msra.mxu0 %v521
        %537 = vmatprep.subr.mxu0 0.0
        %538 = vmatpush1.xpose.msra.mxu0 0.0
        %539 = vmatprep.subr.mxu0 0.0
        %540 = vmatpush1.xpose.msra.mxu0 0.0
        %541 = vmatprep.subr.mxu0 0.0
        %542 = vmatpush1.xpose.msra.mxu0 0.0
        %543 = vmatprep.subr.mxu0 0.0
        %544 = vmatpush1.xpose.msra.mxu0 0.0
        %545 = vmatprep.subr.mxu0 0.0
        %546 = vmatpush1.xpose.msra.mxu0 0.0
        %547 = vmatprep.subr.mxu0 0.0
        %548 = vmatpush1.xpose.msra.mxu0 0.0
        %549 = vmatprep.subr.mxu0 0.0
        %550 = vmatpush1.xpose.msra.mxu0 0.0
        %551 = vmatprep.subr.mxu0 0.0
        %552 = vmatpush1.xpose.msra.mxu0 0.0
        %553 = vmatprep.subr.mxu0 0.0
        %554 = vmatpush1.xpose.msra.mxu0 0.0
        %555 = vmatprep.subr.mxu0 0.0
        %556 = vmatpush1.xpose.msra.mxu0 0.0
        %557 = vmatprep.subr.mxu0 0.0
        %558 = vmatpush1.xpose.msra.mxu0 0.0
        %559 = vmatprep.subr.mxu0 0.0
        %560 = vmatpush1.xpose.msra.mxu0 0.0
        %561 = vmatprep.subr.mxu0 0.0
        %562 = vmatpush1.xpose.msra.mxu0 0.0
        %563 = vmatprep.subr.mxu0 0.0
        %564 = vmatpush1.xpose.msra.mxu0 0.0
        %565 = vmatprep.subr.mxu0 0.0
        %566 = vmatpush1.xpose.msra.mxu0 0.0
        %567 = vmatprep.subr.mxu0 0.0
        %568 = vmatpush1.xpose.msra.mxu0 0.0
        %569 = vmatprep.subr.mxu0 0.0
        %570 = vmatpush1.xpose.msra.mxu0 0.0
        %571 = vmatprep.subr.mxu0 0.0
        %572 = vmatpush1.xpose.msra.mxu0 0.0
        %573 = vmatprep.subr.mxu0 0.0
        %574 = vmatpush1.xpose.msra.mxu0 0.0
        %575 = vmatprep.subr.mxu0 0.0
        %576 = vmatpush1.xpose.msra.mxu0 0.0
        %577 = vmatprep.subr.mxu0 0.0
        %578 = vmatpush1.xpose.msra.mxu0 0.0
        %579 = vmatprep.subr.mxu0 0.0
        %580 = vmatpush1.xpose.msra.mxu0 0.0
        %581 = vmatprep.subr.mxu0 0.0
        %582 = vmatpush1.xpose.msra.mxu0 0.0
        %583 = vmatprep.subr.mxu0 0.0
        %584 = vmatpush1.xpose.msra.mxu0 0.0
        %585 = vmatprep.subr.mxu0 0.0
        %586 = vmatpush1.xpose.msra.mxu0 0.0
        %587 = vmatprep.mubr.f32.mxu0 0.0
        %588 = vmatmul.mubr.f32.gmra.mrb[0].mxu0 %v500
        %v589 = vpop.f32.mrb[0].mxu0
        %v590 = vadd.f32 0.0, %v589
        %v591 = vpop.f32.mrb[0].mxu0
        %592 = vdwg.mxu0
        %v593 = vadd.f32 %v489, %v590
        %v594 = vld [vmem:[%s175 + $0xc0] sm:$0xff]
        %v595 = vld [vmem:[%s175 + $0xc8] sm:$0xff]
        %v596 = vld [vmem:[%s175 + $0xd0] sm:$0xff]
        %v597 = vld [vmem:[%s175 + $0xd8] sm:$0xff]
        %v598 = vld [vmem:[%s175 + $0xe0] sm:$0xff]
        %v599 = vld [vmem:[%s175 + $0xe8] sm:$0xff]
        %v600 = vld [vmem:[%s175 + $0xf0] sm:$0xff]
        %s601 = scalar_lea.vmem %s1, 32
        %v602 = vld [vmem:[%s601] sm:$0xff]
        %v604 = vsel %vm197, %v602, 0
        %v607 = vsel %vm197, %v594, 0
        %v610 = vsel %vm197, %v595, 0
        %v613 = vsel %vm197, %v596, 0
        %v616 = vsel %vm197, %v597, 0
        %v619 = vsel %vm197, %v598, 0
        %v622 = vsel %vm197, %v599, 0
        %v625 = vsel %vm197, %v600, 0
        %627 = vmatprep.subr.mxu0 0.0
        %628 = vmatpush1.xpose.msra.mxu0 %v607
        %629 = vmatprep.subr.mxu0 0.0
        %630 = vmatpush1.xpose.msra.mxu0 %v610
        %631 = vmatprep.subr.mxu0 0.0
        %632 = vmatpush1.xpose.msra.mxu0 %v613
        %633 = vmatprep.subr.mxu0 0.0
        %634 = vmatpush1.xpose.msra.mxu0 %v616
        %635 = vmatprep.subr.mxu0 0.0
        %636 = vmatpush1.xpose.msra.mxu0 %v619
        %637 = vmatprep.subr.mxu0 0.0
        %638 = vmatpush1.xpose.msra.mxu0 %v622
        %639 = vmatprep.subr.mxu0 0.0
        %640 = vmatpush1.xpose.msra.mxu0 %v625
        %641 = vmatprep.subr.mxu0 0.0
        %642 = vmatpush1.xpose.msra.mxu0 0.0
        %643 = vmatprep.subr.mxu0 0.0
        %644 = vmatpush1.xpose.msra.mxu0 0.0
        %645 = vmatprep.subr.mxu0 0.0
        %646 = vmatpush1.xpose.msra.mxu0 0.0
        %647 = vmatprep.subr.mxu0 0.0
        %648 = vmatpush1.xpose.msra.mxu0 0.0
        %649 = vmatprep.subr.mxu0 0.0
        %650 = vmatpush1.xpose.msra.mxu0 0.0
        %651 = vmatprep.subr.mxu0 0.0
        %652 = vmatpush1.xpose.msra.mxu0 0.0
        %653 = vmatprep.subr.mxu0 0.0
        %654 = vmatpush1.xpose.msra.mxu0 0.0
        %655 = vmatprep.subr.mxu0 0.0
        %656 = vmatpush1.xpose.msra.mxu0 0.0
        %657 = vmatprep.subr.mxu0 0.0
        %658 = vmatpush1.xpose.msra.mxu0 0.0
        %659 = vmatprep.subr.mxu0 0.0
        %660 = vmatpush1.xpose.msra.mxu0 0.0
        %661 = vmatprep.subr.mxu0 0.0
        %662 = vmatpush1.xpose.msra.mxu0 0.0
        %663 = vmatprep.subr.mxu0 0.0
        %664 = vmatpush1.xpose.msra.mxu0 0.0
        %665 = vmatprep.subr.mxu0 0.0
        %666 = vmatpush1.xpose.msra.mxu0 0.0
        %667 = vmatprep.subr.mxu0 0.0
        %668 = vmatpush1.xpose.msra.mxu0 0.0
        %669 = vmatprep.subr.mxu0 0.0
        %670 = vmatpush1.xpose.msra.mxu0 0.0
        %671 = vmatprep.subr.mxu0 0.0
        %672 = vmatpush1.xpose.msra.mxu0 0.0
        %673 = vmatprep.subr.mxu0 0.0
        %674 = vmatpush1.xpose.msra.mxu0 0.0
        %675 = vmatprep.subr.mxu0 0.0
        %676 = vmatpush1.xpose.msra.mxu0 0.0
        %677 = vmatprep.subr.mxu0 0.0
        %678 = vmatpush1.xpose.msra.mxu0 0.0
        %679 = vmatprep.subr.mxu0 0.0
        %680 = vmatpush1.xpose.msra.mxu0 0.0
        %681 = vmatprep.subr.mxu0 0.0
        %682 = vmatpush1.xpose.msra.mxu0 0.0
        %683 = vmatprep.subr.mxu0 0.0
        %684 = vmatpush1.xpose.msra.mxu0 0.0
        %685 = vmatprep.subr.mxu0 0.0
        %686 = vmatpush1.xpose.msra.mxu0 0.0
        %687 = vmatprep.subr.mxu0 0.0
        %688 = vmatpush1.xpose.msra.mxu0 0.0
        %689 = vmatprep.subr.mxu0 0.0
        %690 = vmatpush1.xpose.msra.mxu0 0.0
        %691 = vmatprep.mubr.f32.mxu0 0.0
        %692 = vmatmul.mubr.f32.gmra.mrb[0].mxu0 %v604
        %v693 = vpop.f32.mrb[0].mxu0
        %v694 = vadd.f32 0.0, %v693
        %v695 = vpop.f32.mrb[0].mxu0
        %696 = vdwg.mxu0
        %v697 = vadd.f32 %v593, %v694
        %v698 = vld [vmem:[%s175 + $0x81] sm:$0xff]
        %v699 = vld [vmem:[%s175 + $0x89] sm:$0xff]
        %v700 = vld [vmem:[%s175 + $0x91] sm:$0xff]
        %v701 = vld [vmem:[%s175 + $0x99] sm:$0xff]
        %v702 = vld [vmem:[%s175 + $0xa1] sm:$0xff]
        %v703 = vld [vmem:[%s175 + $0xa9] sm:$0xff]
        %v704 = vld [vmem:[%s175 + $0xb1] sm:$0xff]
        %s705 = scalar_lea.vmem %s1, 40
        %v706 = vld [vmem:[%s705] sm:$0xff]
        %v708 = vsel %vm197, %v706, 0
        %v711 = vsel %vm197, %v698, 0
        %v714 = vsel %vm197, %v699, 0
        %v717 = vsel %vm197, %v700, 0
        %v720 = vsel %vm197, %v701, 0
        %v723 = vsel %vm197, %v702, 0
        %v726 = vsel %vm197, %v703, 0
        %v729 = vsel %vm197, %v704, 0
        %731 = vmatprep.subr.mxu0 0.0
        %732 = vmatpush1.xpose.msra.mxu0 %v711
        %733 = vmatprep.subr.mxu0 0.0
        %734 = vmatpush1.xpose.msra.mxu0 %v714
        %735 = vmatprep.subr.mxu0 0.0
        %736 = vmatpush1.xpose.msra.mxu0 %v717
        %737 = vmatprep.subr.mxu0 0.0
        %738 = vmatpush1.xpose.msra.mxu0 %v720
        %739 = vmatprep.subr.mxu0 0.0
        %740 = vmatpush1.xpose.msra.mxu0 %v723
        %741 = vmatprep.subr.mxu0 0.0
        %742 = vmatpush1.xpose.msra.mxu0 %v726
        %743 = vmatprep.subr.mxu0 0.0
        %744 = vmatpush1.xpose.msra.mxu0 %v729
        %745 = vmatprep.subr.mxu0 0.0
        %746 = vmatpush1.xpose.msra.mxu0 0.0
        %747 = vmatprep.subr.mxu0 0.0
        %748 = vmatpush1.xpose.msra.mxu0 0.0
        %749 = vmatprep.subr.mxu0 0.0
        %750 = vmatpush1.xpose.msra.mxu0 0.0
        %751 = vmatprep.subr.mxu0 0.0
        %752 = vmatpush1.xpose.msra.mxu0 0.0
        %753 = vmatprep.subr.mxu0 0.0
        %754 = vmatpush1.xpose.msra.mxu0 0.0
        %755 = vmatprep.subr.mxu0 0.0
        %756 = vmatpush1.xpose.msra.mxu0 0.0
        %757 = vmatprep.subr.mxu0 0.0
        %758 = vmatpush1.xpose.msra.mxu0 0.0
        %759 = vmatprep.subr.mxu0 0.0
        %760 = vmatpush1.xpose.msra.mxu0 0.0
        %761 = vmatprep.subr.mxu0 0.0
        %762 = vmatpush1.xpose.msra.mxu0 0.0
        %763 = vmatprep.subr.mxu0 0.0
        %764 = vmatpush1.xpose.msra.mxu0 0.0
        %765 = vmatprep.subr.mxu0 0.0
        %766 = vmatpush1.xpose.msra.mxu0 0.0
        %767 = vmatprep.subr.mxu0 0.0
        %768 = vmatpush1.xpose.msra.mxu0 0.0
        %769 = vmatprep.subr.mxu0 0.0
        %770 = vmatpush1.xpose.msra.mxu0 0.0
        %771 = vmatprep.subr.mxu0 0.0
        %772 = vmatpush1.xpose.msra.mxu0 0.0
        %773 = vmatprep.subr.mxu0 0.0
        %774 = vmatpush1.xpose.msra.mxu0 0.0
        %775 = vmatprep.subr.mxu0 0.0
        %776 = vmatpush1.xpose.msra.mxu0 0.0
        %777 = vmatprep.subr.mxu0 0.0
        %778 = vmatpush1.xpose.msra.mxu0 0.0
        %779 = vmatprep.subr.mxu0 0.0
        %780 = vmatpush1.xpose.msra.mxu0 0.0
        %781 = vmatprep.subr.mxu0 0.0
        %782 = vmatpush1.xpose.msra.mxu0 0.0
        %783 = vmatprep.subr.mxu0 0.0
        %784 = vmatpush1.xpose.msra.mxu0 0.0
        %785 = vmatprep.subr.mxu0 0.0
        %786 = vmatpush1.xpose.msra.mxu0 0.0
        %787 = vmatprep.subr.mxu0 0.0
        %788 = vmatpush1.xpose.msra.mxu0 0.0
        %789 = vmatprep.subr.mxu0 0.0
        %790 = vmatpush1.xpose.msra.mxu0 0.0
        %791 = vmatprep.subr.mxu0 0.0
        %792 = vmatpush1.xpose.msra.mxu0 0.0
        %793 = vmatprep.subr.mxu0 0.0
        %794 = vmatpush1.xpose.msra.mxu0 0.0
        %795 = vmatprep.mubr.f32.mxu0 0.0
        %796 = vmatmul.mubr.f32.gmra.mrb[0].mxu0 %v708
        %v797 = vpop.f32.mrb[0].mxu0
        %v798 = vadd.f32 0.0, %v797
        %v799 = vpop.f32.mrb[0].mxu0
        %800 = vdwg.mxu0
        %v801 = vadd.f32 %v697, %v798
        %v802 = vld [vmem:[%s175 + $0x8] sm:$0xff]
        %v803 = vld [vmem:[%s175 + $0x10] sm:$0xff]
        %v804 = vld [vmem:[%s175 + $0x18] sm:$0xff]
        %v805 = vld [vmem:[%s175 + $0x20] sm:$0xff]
        %v806 = vld [vmem:[%s175 + $0x28] sm:$0xff]
        %v807 = vld [vmem:[%s175 + $0x30] sm:$0xff]
        %v808 = vld [vmem:[%s175 + $0x38] sm:$0xff]
        %s809 = scalar_lea.vmem %s1, 48
        %v810 = vld [vmem:[%s809] sm:$0xff]
        %v812 = vsel %vm197, %v810, 0
        %v815 = vsel %vm197, %v802, 0
        %v818 = vsel %vm197, %v803, 0
        %v821 = vsel %vm197, %v804, 0
        %v824 = vsel %vm197, %v805, 0
        %v827 = vsel %vm197, %v806, 0
        %v830 = vsel %vm197, %v807, 0
        %v833 = vsel %vm197, %v808, 0
        %835 = vmatprep.subr.mxu0 0.0
        %836 = vmatpush1.xpose.msra.mxu0 %v815
        %837 = vmatprep.subr.mxu0 0.0
        %838 = vmatpush1.xpose.msra.mxu0 %v818
        %839 = vmatprep.subr.mxu0 0.0
        %840 = vmatpush1.xpose.msra.mxu0 %v821
        %841 = vmatprep.subr.mxu0 0.0
        %842 = vmatpush1.xpose.msra.mxu0 %v824
        %843 = vmatprep.subr.mxu0 0.0
        %844 = vmatpush1.xpose.msra.mxu0 %v827
        %845 = vmatprep.subr.mxu0 0.0
        %846 = vmatpush1.xpose.msra.mxu0 %v830
        %847 = vmatprep.subr.mxu0 0.0
        %848 = vmatpush1.xpose.msra.mxu0 %v833
        %849 = vmatprep.subr.mxu0 0.0
        %850 = vmatpush1.xpose.msra.mxu0 0.0
        %851 = vmatprep.subr.mxu0 0.0
        %852 = vmatpush1.xpose.msra.mxu0 0.0
        %853 = vmatprep.subr.mxu0 0.0
        %854 = vmatpush1.xpose.msra.mxu0 0.0
        %855 = vmatprep.subr.mxu0 0.0
        %856 = vmatpush1.xpose.msra.mxu0 0.0
        %857 = vmatprep.subr.mxu0 0.0
        %858 = vmatpush1.xpose.msra.mxu0 0.0
        %859 = vmatprep.subr.mxu0 0.0
        %860 = vmatpush1.xpose.msra.mxu0 0.0
        %861 = vmatprep.subr.mxu0 0.0
        %862 = vmatpush1.xpose.msra.mxu0 0.0
        %863 = vmatprep.subr.mxu0 0.0
        %864 = vmatpush1.xpose.msra.mxu0 0.0
        %865 = vmatprep.subr.mxu0 0.0
        %866 = vmatpush1.xpose.msra.mxu0 0.0
        %867 = vmatprep.subr.mxu0 0.0
        %868 = vmatpush1.xpose.msra.mxu0 0.0
        %869 = vmatprep.subr.mxu0 0.0
        %870 = vmatpush1.xpose.msra.mxu0 0.0
        %871 = vmatprep.subr.mxu0 0.0
        %872 = vmatpush1.xpose.msra.mxu0 0.0
        %873 = vmatprep.subr.mxu0 0.0
        %874 = vmatpush1.xpose.msra.mxu0 0.0
        %875 = vmatprep.subr.mxu0 0.0
        %876 = vmatpush1.xpose.msra.mxu0 0.0
        %877 = vmatprep.subr.mxu0 0.0
        %878 = vmatpush1.xpose.msra.mxu0 0.0
        %879 = vmatprep.subr.mxu0 0.0
        %880 = vmatpush1.xpose.msra.mxu0 0.0
        %881 = vmatprep.subr.mxu0 0.0
        %882 = vmatpush1.xpose.msra.mxu0 0.0
        %883 = vmatprep.subr.mxu0 0.0
        %884 = vmatpush1.xpose.msra.mxu0 0.0
        %885 = vmatprep.subr.mxu0 0.0
        %886 = vmatpush1.xpose.msra.mxu0 0.0
        %887 = vmatprep.subr.mxu0 0.0
        %888 = vmatpush1.xpose.msra.mxu0 0.0
        %889 = vmatprep.subr.mxu0 0.0
        %890 = vmatpush1.xpose.msra.mxu0 0.0
        %891 = vmatprep.subr.mxu0 0.0
        %892 = vmatpush1.xpose.msra.mxu0 0.0
        %893 = vmatprep.subr.mxu0 0.0
        %894 = vmatpush1.xpose.msra.mxu0 0.0
        %895 = vmatprep.subr.mxu0 0.0
        %896 = vmatpush1.xpose.msra.mxu0 0.0
        %897 = vmatprep.subr.mxu0 0.0
        %898 = vmatpush1.xpose.msra.mxu0 0.0
        %899 = vmatprep.mubr.f32.mxu0 0.0
        %900 = vmatmul.mubr.f32.gmra.mrb[0].mxu0 %v812
        %v901 = vpop.f32.mrb[0].mxu0
        %v902 = vadd.f32 0.0, %v901
        %v903 = vpop.f32.mrb[0].mxu0
        %904 = vdwg.mxu0
        %v905 = vadd.f32 %v801, %v902
        %v906 = vld [vmem:[%s175 + $0x48] sm:$0xff]
        %v907 = vld [vmem:[%s175 + $0x50] sm:$0xff]
        %v908 = vld [vmem:[%s175 + $0x58] sm:$0xff]
        %v909 = vld [vmem:[%s175 + $0x60] sm:$0xff]
        %v910 = vld [vmem:[%s175 + $0x68] sm:$0xff]
        %v911 = vld [vmem:[%s175 + $0x70] sm:$0xff]
        %v912 = vld [vmem:[%s175 + $0x78] sm:$0xff]
        %s913 = scalar_lea.vmem %s1, 56
        %v914 = vld [vmem:[%s913] sm:$0xff]
        %v916 = vsel %vm197, %v914, 0
        %v919 = vsel %vm197, %v906, 0
        %v922 = vsel %vm197, %v907, 0
        %v925 = vsel %vm197, %v908, 0
        %v928 = vsel %vm197, %v909, 0
        %v931 = vsel %vm197, %v910, 0
        %v934 = vsel %vm197, %v911, 0
        %v937 = vsel %vm197, %v912, 0
        %939 = vmatprep.subr.mxu0 0.0
        %940 = vmatpush1.xpose.msra.mxu0 %v919
        %941 = vmatprep.subr.mxu0 0.0
        %942 = vmatpush1.xpose.msra.mxu0 %v922
        %943 = vmatprep.subr.mxu0 0.0
        %944 = vmatpush1.xpose.msra.mxu0 %v925
        %945 = vmatprep.subr.mxu0 0.0
        %946 = vmatpush1.xpose.msra.mxu0 %v928
        %947 = vmatprep.subr.mxu0 0.0
        %948 = vmatpush1.xpose.msra.mxu0 %v931
        %949 = vmatprep.subr.mxu0 0.0
        %950 = vmatpush1.xpose.msra.mxu0 %v934
        %951 = vmatprep.subr.mxu0 0.0
        %952 = vmatpush1.xpose.msra.mxu0 %v937
        %953 = vmatprep.subr.mxu0 0.0
        %954 = vmatpush1.xpose.msra.mxu0 0.0
        %955 = vmatprep.subr.mxu0 0.0
        %956 = vmatpush1.xpose.msra.mxu0 0.0
        %957 = vmatprep.subr.mxu0 0.0
        %958 = vmatpush1.xpose.msra.mxu0 0.0
        %959 = vmatprep.subr.mxu0 0.0
        %960 = vmatpush1.xpose.msra.mxu0 0.0
        %961 = vmatprep.subr.mxu0 0.0
        %962 = vmatpush1.xpose.msra.mxu0 0.0
        %963 = vmatprep.subr.mxu0 0.0
        %964 = vmatpush1.xpose.msra.mxu0 0.0
        %965 = vmatprep.subr.mxu0 0.0
        %966 = vmatpush1.xpose.msra.mxu0 0.0
        %967 = vmatprep.subr.mxu0 0.0
        %968 = vmatpush1.xpose.msra.mxu0 0.0
        %969 = vmatprep.subr.mxu0 0.0
        %970 = vmatpush1.xpose.msra.mxu0 0.0
        %971 = vmatprep.subr.mxu0 0.0
        %972 = vmatpush1.xpose.msra.mxu0 0.0
        %973 = vmatprep.subr.mxu0 0.0
        %974 = vmatpush1.xpose.msra.mxu0 0.0
        %975 = vmatprep.subr.mxu0 0.0
        %976 = vmatpush1.xpose.msra.mxu0 0.0
        %977 = vmatprep.subr.mxu0 0.0
        %978 = vmatpush1.xpose.msra.mxu0 0.0
        %979 = vmatprep.subr.mxu0 0.0
        %980 = vmatpush1.xpose.msra.mxu0 0.0
        %981 = vmatprep.subr.mxu0 0.0
        %982 = vmatpush1.xpose.msra.mxu0 0.0
        %983 = vmatprep.subr.mxu0 0.0
        %984 = vmatpush1.xpose.msra.mxu0 0.0
        %985 = vmatprep.subr.mxu0 0.0
        %986 = vmatpush1.xpose.msra.mxu0 0.0
        %987 = vmatprep.subr.mxu0 0.0
        %988 = vmatpush1.xpose.msra.mxu0 0.0
        %989 = vmatprep.subr.mxu0 0.0
        %990 = vmatpush1.xpose.msra.mxu0 0.0
        %991 = vmatprep.subr.mxu0 0.0
        %992 = vmatpush1.xpose.msra.mxu0 0.0
        %993 = vmatprep.subr.mxu0 0.0
        %994 = vmatpush1.xpose.msra.mxu0 0.0
        %995 = vmatprep.subr.mxu0 0.0
        %996 = vmatpush1.xpose.msra.mxu0 0.0
        %997 = vmatprep.subr.mxu0 0.0
        %998 = vmatpush1.xpose.msra.mxu0 0.0
        %999 = vmatprep.subr.mxu0 0.0
        %1000 = vmatpush1.xpose.msra.mxu0 0.0
        %1001 = vmatprep.subr.mxu0 0.0
        %1002 = vmatpush1.xpose.msra.mxu0 0.0
        %1003 = vmatprep.mubr.f32.mxu0 0.0
        %1004 = vmatmul.mubr.f32.gmra.mrb[0].mxu0 %v916
        %v1005 = vpop.f32.mrb[0].mxu0
        %v1006 = vadd.f32 0.0, %v1005
        %v1007 = vpop.f32.mrb[0].mxu0
        %1008 = vdwg.mxu0
        %v1009 = vadd.f32 %v905, %v1006
        %v1010 = vld [vmem:[%s175 + $0x9] sm:$0xff]
        %v1011 = vld [vmem:[%s175 + $0x11] sm:$0xff]
        %v1012 = vld [vmem:[%s175 + $0x19] sm:$0xff]
        %v1013 = vld [vmem:[%s175 + $0x21] sm:$0xff]
        %v1014 = vld [vmem:[%s175 + $0x29] sm:$0xff]
        %v1015 = vld [vmem:[%s175 + $0x31] sm:$0xff]
        %v1016 = vld [vmem:[%s175 + $0x39] sm:$0xff]
        %s1017 = scalar_lea.vmem %s1, 64
        %v1018 = vld [vmem:[%s1017] sm:$0xff]
        %v1020 = vsel %vm197, %v1018, 0
        %v1023 = vsel %vm197, %v1010, 0
        %v1026 = vsel %vm197, %v1011, 0
        %v1029 = vsel %vm197, %v1012, 0
        %v1032 = vsel %vm197, %v1013, 0
        %v1035 = vsel %vm197, %v1014, 0
        %v1038 = vsel %vm197, %v1015, 0
        %v1041 = vsel %vm197, %v1016, 0
        %1043 = vmatprep.subr.mxu0 0.0
        %1044 = vmatpush1.xpose.msra.mxu0 %v1023
        %1045 = vmatprep.subr.mxu0 0.0
        %1046 = vmatpush1.xpose.msra.mxu0 %v1026
        %1047 = vmatprep.subr.mxu0 0.0
        %1048 = vmatpush1.xpose.msra.mxu0 %v1029
        %1049 = vmatprep.subr.mxu0 0.0
        %1050 = vmatpush1.xpose.msra.mxu0 %v1032
        %1051 = vmatprep.subr.mxu0 0.0
        %1052 = vmatpush1.xpose.msra.mxu0 %v1035
        %1053 = vmatprep.subr.mxu0 0.0
        %1054 = vmatpush1.xpose.msra.mxu0 %v1038
        %1055 = vmatprep.subr.mxu0 0.0
        %1056 = vmatpush1.xpose.msra.mxu0 %v1041
        %1057 = vmatprep.subr.mxu0 0.0
        %1058 = vmatpush1.xpose.msra.mxu0 0.0
        %1059 = vmatprep.subr.mxu0 0.0
        %1060 = vmatpush1.xpose.msra.mxu0 0.0
        %1061 = vmatprep.subr.mxu0 0.0
        %1062 = vmatpush1.xpose.msra.mxu0 0.0
        %1063 = vmatprep.subr.mxu0 0.0
        %1064 = vmatpush1.xpose.msra.mxu0 0.0
        %1065 = vmatprep.subr.mxu0 0.0
        %1066 = vmatpush1.xpose.msra.mxu0 0.0
        %1067 = vmatprep.subr.mxu0 0.0
        %1068 = vmatpush1.xpose.msra.mxu0 0.0
        %1069 = vmatprep.subr.mxu0 0.0
        %1070 = vmatpush1.xpose.msra.mxu0 0.0
        %1071 = vmatprep.subr.mxu0 0.0
        %1072 = vmatpush1.xpose.msra.mxu0 0.0
        %1073 = vmatprep.subr.mxu0 0.0
        %1074 = vmatpush1.xpose.msra.mxu0 0.0
        %1075 = vmatprep.subr.mxu0 0.0
        %1076 = vmatpush1.xpose.msra.mxu0 0.0
        %1077 = vmatprep.subr.mxu0 0.0
        %1078 = vmatpush1.xpose.msra.mxu0 0.0
        %1079 = vmatprep.subr.mxu0 0.0
        %1080 = vmatpush1.xpose.msra.mxu0 0.0
        %1081 = vmatprep.subr.mxu0 0.0
        %1082 = vmatpush1.xpose.msra.mxu0 0.0
        %1083 = vmatprep.subr.mxu0 0.0
        %1084 = vmatpush1.xpose.msra.mxu0 0.0
        %1085 = vmatprep.subr.mxu0 0.0
        %1086 = vmatpush1.xpose.msra.mxu0 0.0
        %1087 = vmatprep.subr.mxu0 0.0
        %1088 = vmatpush1.xpose.msra.mxu0 0.0
        %1089 = vmatprep.subr.mxu0 0.0
        %1090 = vmatpush1.xpose.msra.mxu0 0.0
        %1091 = vmatprep.subr.mxu0 0.0
        %1092 = vmatpush1.xpose.msra.mxu0 0.0
        %1093 = vmatprep.subr.mxu0 0.0
        %1094 = vmatpush1.xpose.msra.mxu0 0.0
        %1095 = vmatprep.subr.mxu0 0.0
        %1096 = vmatpush1.xpose.msra.mxu0 0.0
        %1097 = vmatprep.subr.mxu0 0.0
        %1098 = vmatpush1.xpose.msra.mxu0 0.0
        %1099 = vmatprep.subr.mxu0 0.0
        %1100 = vmatpush1.xpose.msra.mxu0 0.0
        %1101 = vmatprep.subr.mxu0 0.0
        %1102 = vmatpush1.xpose.msra.mxu0 0.0
        %1103 = vmatprep.subr.mxu0 0.0
        %1104 = vmatpush1.xpose.msra.mxu0 0.0
        %1105 = vmatprep.subr.mxu0 0.0
        %1106 = vmatpush1.xpose.msra.mxu0 0.0
        %1107 = vmatprep.mubr.f32.mxu0 0.0
        %1108 = vmatmul.mubr.f32.gmra.mrb[0].mxu0 %v1020
        %v1109 = vpop.f32.mrb[0].mxu0
        %v1110 = vadd.f32 0.0, %v1109
        %v1111 = vpop.f32.mrb[0].mxu0
        %1112 = vdwg.mxu0
        %v1113 = vadd.f32 %v1009, %v1110
        %v1114 = vlaneseq
        %v1115 = vand.u32 %v1114, 127
        %vm1116 = vcmp.lt.s32.totalorder %v1115, 0
        %v1117 = vsub.s32 0, %v1115
        %v1118 = vsel %vm1116, %v1117, %v1115
        %v1119 = vshrl.u32 %v1118, 3
        %v1120 = vand.u32 %v1118, 7
        %v1121 = vsub.s32 0, %v1120
        %v1122 = vsel %vm1116, %v1121, %v1120
        %vm1123 = vcmp.ne.s32.totalorder %v1122, 0
        %vm1124 = vcmp.lt.s32.totalorder %v1122, 0
        %vm1125 = vmand %vm1124, %vm1123
        %v1126 = vadd.s32 %v1122, 8
        %v1127 = vsel %vm1125, %v1126, %v1122
        %vm1128 = vcmp.lt.s32.totalorder %v1127, 7
        %v1129 = vsel %vm1128, %v1113, 0.0
        %vm1130 = vcmask 457728
        %v1131 = vsel %vm1130, %v1129, 0.0
        %1132 = vadd.xlane.f32.xlu0 %v1131
        %v1133 = vpop.xlane.xlu0 %1132
        %v1134 = vmul.f32 %v1129, %v1129
        %v1135 = vsel %vm1130, %v1134, 0.0
        %1136 = vadd.xlane.f32.xlu0 %v1135
        %v1137 = vpop.xlane.xlu0 %1136
        %vm1138 = vcmask 7168
        %v1139 = vsel %vm1138, %v1133, %v1137
        %vm1140 = vcmask 15360
        %1141 = vst.msk [vmem:[%s179] sm:$0xff] %vm1140, %v1139
        %1142 = vst [vmem:[%s164] sm:$0xff] %v1131
        %s1143 = sand.u32 %s73, 1
        %s1144 = scalar_lea.sflag [#allocation3], %s1143
        %s1145 = sand.u32 %s73, 1
        %s1146 = smul.addr %s1145, 8
        %s1147 = scalar_lea.vmem [#allocation2], %s1146
        %p1148 = scmp.lt.s32.totalorder %s18, 1
        %s1149 = scalar_select %p1148, %s18, 1
        %s1150 = smul.addr %s1149, 8
        %s1151 = scalar_lea.vmem %s3, %s1150
        // Predicated region
        $region29: #{tpu_custom_call.1} parent=27 // pred_check
          %p1152 = pneg %p83
        $region30: #{tpu_custom_call.1} parent=27 // pred_check_branch
          %1154 = sbr.rel (%p1152) target = $region32
        $region31: #{tpu_custom_call.1} parent=27 // pred_region
          %s1156 = ssub.s32 128, 128
          %1157 = vsyncadd %s1144, %s1156
          %s1158 = smul.addr %s18, 128
          %s1159 = scalar_lea.hbm %s2, %s1158
          %s1161 = sshll.u32 %s1147, 4
          %s1162 = int_to_ptr.vmem [resolvable:$true] %s1161
          %1164 = dma.vmem_to_hbm [thread:$0]  %s1162, 128, %s1159, %s1144
        $region32: #{tpu_custom_call.1} parent=27 // pred_fallthru
          _
        // Predicated region
        $region33: #{tpu_custom_call.1} parent=27 // pred_check
          %p1165 = pneg %p109
        $region34: #{tpu_custom_call.1} parent=27 // pred_check_branch
          %1167 = sbr.rel (%p1165) target = $region36
        $region35: #{tpu_custom_call.1} parent=27 // pred_region
          _
        $region36: #{tpu_custom_call.1} parent=27 // pred_fallthru
          _
      $region28: #{tpu_custom_call.1} parent=5 // pred_fallthru
        _
      %p1168 = scmp.le.s32.totalorder 2, %s13
      // Predicated region
      $region37: #{tpu_custom_call.1} parent=5 // pred_check
        %p1169 = pneg %p1168
      $region38: #{tpu_custom_call.1} parent=5 // pred_check_branch
        %1171 = sbr.rel (%p1169) target = $region40
      $region39: #{tpu_custom_call.1} parent=5 // pred_region
        %s1172 = ssub.s32 %s13, 2
        // Predicated region
        $region41: #{tpu_custom_call.1} parent=39 // pred_check
          %p1173 = pneg %p89
        $region42: #{tpu_custom_call.1} parent=39 // pred_check_branch
          %1175 = sbr.rel (%p1173) target = $region44
        $region43: #{tpu_custom_call.1} parent=39 // pred_region
          %s1176 = sand.u32 %s74, 1
          %s1177 = scalar_lea.sflag [#allocation3], %s1176
          %s1178 = sand.u32 %s74, 1
          %s1179 = smul.addr %s1178, 8
          %s1180 = scalar_lea.vmem [#allocation2], %s1179
          %1181 = dma.done %s1177, 128
        $region44: #{tpu_custom_call.1} parent=39 // pred_fallthru
          _
        // Predicated region
        $region45: #{tpu_custom_call.1} parent=39 // pred_check
          %p1182 = pneg %p115
        $region46: #{tpu_custom_call.1} parent=39 // pred_check_branch
          %1184 = sbr.rel (%p1182) target = $region48
        $region47: #{tpu_custom_call.1} parent=39 // pred_region
          %p1185 = scmp.lt.s32.totalorder %s19, 1
          %s1186 = scalar_select %p1185, %s19, 1
          %s1187 = smul.addr %s1186, 8
          %s1188 = scalar_lea.vmem %s3, %s1187
        $region48: #{tpu_custom_call.1} parent=39 // pred_fallthru
          _
      $region40: #{tpu_custom_call.1} parent=5 // pred_fallthru
        _
    $region6: #{tpu_custom_call.1} parent=1 // loop_footer
      %s17 = sadd.s32 1, %s13
    $region7: #{tpu_custom_call.1} parent=1 // loop_footer_branch
      %12 = sbr.rel target = $region3
    $region8: #{tpu_custom_call.1} parent=1 // loop_exit
      _
    %1189 = vsyncpa [#allocation3], 1
    %s1190 = scalar_lea.sflag [#allocation3], 1
    %1191 = vsyncpa %s1190, 1

</llo_original>
